<compile_context>
chip_gen: v6e
topology: v6e:2x2x1
jax: 0.10.0
libtpu: 0.0.40
codegen_flags: <defaults>
</compile_context>

<pallas_src>
import math

import jax
import jax.numpy as jnp
from jax.experimental import pallas as pl
from jax.experimental.pallas import tpu as pltpu


def _round_up(x, m):
    return (x + m - 1) // m * m


def _conv1x1_kernel(w_ref, x_ref, o_ref):
    # w_ref: (Cout_total, Cin)  -- tiny, resident across the whole grid
    # x_ref: (Cin, TW)          -- lane-dense spatial tile (whole input rows)
    # o_ref: (Cout_total, TW)   -- lane-dense output tile
    o_ref[...] = jnp.dot(
        w_ref[...], x_ref[...], preferred_element_type=jnp.float32
    ).astype(o_ref.dtype)


def _vmem_capacity_bytes():
    """Generation-aware VMEM capacity (v5e/v6e: 128 MiB, v7x: 64 MiB per TC)."""
    try:
        info = pltpu.get_tpu_info()
        cap = int(getattr(info, "vmem_capacity_bytes", 0) or 0)
        if cap > 0:
            return cap
    except Exception:
        pass
    return 64 * 1024 * 1024  # conservative default (v7x-sized)


def _choose_row_tile(n, cin, cout, h, w, itemsize, vmem_capacity):
    """Pick th = input rows per grid step such that:
       * th divides H exactly                  -> no padding / slicing passes
       * th*W is a multiple of 128             -> lane-dense, unmasked stores
       * double-buffered blocks fit the budget -> no silent VMEM blow-up
       * small N keeps several tiles per image -> pipelining + 2-TC sharding
    Falls back to th == H (whole-image tile, always a legal block)."""
    g = 128 // math.gcd(w, 128)  # smallest th with (th * w) % 128 == 0
    cands = [th for th in range(g, h + 1, g) if h % th == 0]
    if not cands:
        return h

    budget = max(vmem_capacity // 4, 4 * 1024 * 1024)
    per_lane = 2 * (_round_up(cin, 8) + _round_up(cout, 8)) * itemsize
    max_tw = max(128, budget // per_lane)

    if n >= 8:
        min_tiles = 1
    elif n >= 2:
        min_tiles = 2
    else:
        min_tiles = 4

    best = cands[0]
    for th in cands:  # ascending: ends at the largest th meeting both limits
        if th * w <= max_tw and (h // th) >= min_tiles:
            best = th
    return best


def conv1x1_pallas(x, weight):
    """x: (N, Cin, H, W) NCHW; weight: (Cout_total, Cin).
    Returns (N, Cout_total, H, W); I/O in x.dtype, f32 accumulation."""
    n, cin, h, w = x.shape
    cout, cin_w = weight.shape
    assert cin_w == cin, (cin_w, cin)
    weight = weight.astype(x.dtype)  # bf16 path: bf16 I/O, f32 MXU accumulation

    itemsize = jnp.dtype(x.dtype).itemsize
    vmem_cap = _vmem_capacity_bytes()
    th = _choose_row_tile(n, cin, cout, h, w, itemsize, vmem_cap)
    tw = th * w
    hw = h * w
    n_tiles = h // th

    x_flat = x.reshape(n, cin, hw)  # free: NCHW is contiguous over (H, W)

    blocks_bytes = 2 * (_round_up(cin, 8) + _round_up(cout, 8)) * tw * itemsize
    vmem_limit = int(min(0.9 * vmem_cap, max(blocks_bytes + (8 << 20), 32 << 20)))

    cost = pl.CostEstimate(
        flops=2 * n * cout * cin * hw,
        transcendentals=0,
        bytes_accessed=(n * cin * hw + n * cout * hw + cout * cin) * itemsize,
    )

    y = pl.pallas_call(
        _conv1x1_kernel,
        out_shape=jax.ShapeDtypeStruct((n, cout, hw), x.dtype),
        grid_spec=pltpu.PrefetchScalarGridSpec(
            num_scalar_prefetch=0,
            grid=(n, n_tiles),
            in_specs=[
                # Tiny weight: single resident block.
                pl.BlockSpec((cout, cin), lambda b, t: (0, 0)),
                # x: full channel dim, lane-dense row-tile, batch squeezed.
                pl.BlockSpec((None, cin, tw), lambda b, t: (b, 0, t)),
            ],
            out_specs=pl.BlockSpec((None, cout, tw), lambda b, t: (b, 0, t)),
        ),
        compiler_params=pltpu.CompilerParams(
            dimension_semantics=("parallel", "parallel"),
            vmem_limit_bytes=vmem_limit,
        ),
        cost_estimate=cost,
    )(weight, x_flat)

    return y.reshape(n, cout, h, w)


def pixel_shuffler_forward(x, weight, scale):
    """x: (N, C_in, H, W) NCHW; weight: Conv2d weight (out_ch*scale^2, C_in[,1,1]).

    Matches nn.PixelShuffle(scale)(nn.Conv2d(in_ch, out_ch*scale**2, 1,
    bias=False)(x)); returns (N, out_ch, H*scale, W*scale)."""
    n, cin, h, w = x.shape
    if weight.ndim == 4:  # accept raw Conv2d weight (Cout_total, Cin, 1, 1)
        weight = weight.reshape(weight.shape[0], weight.shape[1])
    cout_total = weight.shape[0]
    r = scale
    assert cout_total % (r * r) == 0
    out_ch = cout_total // (r * r)

    y = conv1x1_pallas(x, weight)  # (N, out_ch*r*r, H, W)

    # PixelShuffle epilogue: layout-only, one fused XLA transpose pass.
    # TODO(synk): move into the kernel store path (see header comment).
    y = y.reshape(n, out_ch, r, r, h, w)
    y = jnp.transpose(y, (0, 1, 4, 2, 5, 3))
    return y.reshape(n, out_ch, h * r, w * r)


if __name__ == "__main__":
    key = jax.random.PRNGKey(0)
    k_x, k_w, k_x2 = jax.random.split(key, 3)

    def reference(x, w2d, r):
        nn_, _, hh, ww = x.shape
        oc = w2d.shape[0] // (r * r)
        y = jnp.einsum("nchw,oc->nohw", x.astype(jnp.float32), w2d.astype(jnp.float32))
        y = y.reshape(nn_, oc, r, r, hh, ww)
        return jnp.transpose(y, (0, 1, 4, 2, 5, 3)).reshape(nn_, oc, hh * r, ww * r)

    in_ch, out_ch, scale = 4, 4, 2

    # Case A: module-sized config, f32, H*W a multiple of 128 (row-tiled path).
    N, H, W = 2, 16, 16
    x = jax.random.normal(k_x, (N, in_ch, H, W), dtype=jnp.float32)
    wgt = jax.random.normal(
        k_w, (out_ch * scale ** 2, in_ch, 1, 1), dtype=jnp.float32
    ) * 0.1
    w2d = wgt.reshape(out_ch * scale ** 2, in_ch)

    out = pixel_shuffler_forward(x, wgt, scale)
    jax.block_until_ready(out)
    ref = reference(x, w2d, scale)
    assert out.shape == (N, out_ch, H * scale, W * scale), out.shape
    assert jnp.allclose(out, ref, atol=1e-5, rtol=1e-5)

    # Case B: N=1, ragged spatial (H*W = 240, not a multiple of 128) ->
    # whole-image tile fallback, still no padding or slicing anywhere.
    N2, H2, W2 = 1, 12, 20
    x2 = jax.random.normal(k_x2, (N2, in_ch, H2, W2), dtype=jnp.float32)
    out2 = pixel_shuffler_forward(x2, wgt, scale)
    jax.block_until_ready(out2)
    ref2 = reference(x2, w2d, scale)
    assert out2.shape == (N2, out_ch, H2 * scale, W2 * scale), out2.shape
    assert jnp.allclose(out2, ref2, atol=1e-5, rtol=1e-5)

    # Case C: bf16 I/O passthrough (f32 accumulation in-kernel).
    xb = x.astype(jnp.bfloat16)
    wb = wgt.astype(jnp.bfloat16)
    outb = pixel_shuffler_forward(xb, wb, scale)
    jax.block_until_ready(outb)
    refb = reference(xb, wb.reshape(out_ch * scale ** 2, in_ch), scale).astype(
        jnp.bfloat16
    )
    assert outb.dtype == jnp.bfloat16
    assert jnp.allclose(
        outb.astype(jnp.float32), refb.astype(jnp.float32), atol=2e-2, rtol=2e-2
    )

    print("KERNEL_OK")
</pallas_src>

<mosaic_0001>
module attributes {stable_mosaic.version = 11 : i64} {
  func.func @_conv1x1_kernel(%arg0: i32, %arg1: i32, %arg2: memref<16x4xf32, #tpu.memory_space<vmem>>, %arg3: memref<1x4x128xf32, #tpu.memory_space<vmem>>, %arg4: memref<1x16x128xf32, #tpu.memory_space<vmem>>) attributes {dimension_semantics = [#tpu.dimension_semantics<parallel>, #tpu.dimension_semantics<parallel>], iteration_bounds = array<i64: 2, 2>, scalar_prefetch = 0 : i64, scratch_operands = 0 : i64, tpu.core_type = #tpu.core_type<tc>, window_params = [{pipeline_mode = #tpu.pipeline_mode<synchronous>, transform_indices = @transform_0, window_bounds = array<i64: 16, 4>}, {transform_indices = @transform_1, window_bounds = array<i64: 1, 4, 128>}, {transform_indices = @transform_2, window_bounds = array<i64: 1, 16, 128>}]} {
    %c0 = arith.constant 0 : index
    %c0_0 = arith.constant 0 : index
    %0 = vector.load %arg2[%c0, %c0_0] : memref<16x4xf32, #tpu.memory_space<vmem>>, vector<16x4xf32>
    %c0_1 = arith.constant 0 : index
    %c0_2 = arith.constant 0 : index
    %c0_3 = arith.constant 0 : index
    %1 = vector.load %arg3[%c0_1, %c0_2, %c0_3] : memref<1x4x128xf32, #tpu.memory_space<vmem>>, vector<1x4x128xf32>
    %2 = vector.shape_cast %1 : vector<1x4x128xf32> to vector<4x128xf32>
    %cst = arith.constant dense<0.000000e+00> : vector<16x128xf32>
    %3 = tpu.matmul %0, %2, %cst {dimension_numbers = #tpu.dot_dimension_numbers<[1], [0], [0], [1], [0, 0, 1, 1], [], []>} : vector<16x4xf32>, vector<4x128xf32>, vector<16x128xf32> -> vector<16x128xf32>
    %c0_4 = arith.constant 0 : index
    %c0_5 = arith.constant 0 : index
    %c0_6 = arith.constant 0 : index
    %4 = vector.load %arg4[%c0_4, %c0_5, %c0_6] : memref<1x16x128xf32, #tpu.memory_space<vmem>>, vector<1x16x128xf32>
    %5 = vector.shape_cast %4 : vector<1x16x128xf32> to vector<16x128xf32>
    %6 = vector.shape_cast %3 : vector<16x128xf32> to vector<1x16x128xf32>
    tpu.vector_store %arg4[%c0_4, %c0_5, %c0_6], %6 {strides = array<i32>} : memref<1x16x128xf32, #tpu.memory_space<vmem>>, vector<1x16x128xf32>,
    return
  }
  func.func @transform_0(%arg0: i32, %arg1: i32) -> (i32, i32) {
    %c0_i32 = arith.constant 0 : i32
    %c0_i32_0 = arith.constant 0 : i32
    %c0_i32_1 = arith.constant 0 : i32
    return %c0_i32, %c0_i32_0 : i32, i32
  }
  func.func @transform_1(%arg0: i32, %arg1: i32) -> (i32, i32, i32) {
    %c0_i32 = arith.constant 0 : i32
    %c0_i32_0 = arith.constant 0 : i32
    return %arg0, %c0_i32, %arg1 : i32, i32, i32
  }
  func.func @transform_2(%arg0: i32, %arg1: i32) -> (i32, i32, i32) {
    %c0_i32 = arith.constant 0 : i32
    %c0_i32_0 = arith.constant 0 : i32
    return %arg0, %c0_i32, %arg1 : i32, i32, i32
  }
}

</mosaic_0001>

<llo_original>
// kernel: tpu_custom_call.1
$region0: #{tpu_custom_call.1}
  #allocation0 [shape = 'u32[]', space=smem, size = 0x4, offset = 0x4, fixed_abs, tag = 'smem constant byte address 0x4 - core index']
  #allocation1 [shape = 'u32[144,128]{1,0:T(1,128)}', space=vmem, size = 0x12000, scoped, tag = 'internal scratch']
  %s0 = inlined_call_operand.vmem [shape: f32[16,4], index: 0, kind: input, shape index: {}]
  %s1 = inlined_call_operand.vmem [shape: f32[2,4,256], index: 1, kind: input, shape index: {}]
  %s2 = inlined_call_operand.hbm [shape: f32[2,16,256], index: 2, kind: output, shape index: {}]
  %s3 = sld [smem:[#allocation0]]
  $region41: #{tpu_custom_call.1} parent=0
    _
  %s5 = ssub.s32 1, %s3
  %s6 = scalar_select 0, %s5, %s3
  $region1: #{tpu_custom_call.1} parent=0
    #allocation2 [shape = 'u8[16384]{0}', space=vmem, size = 0x4000, scoped, tag = 'output window, operand 0']
    #allocation3 [shape = 's32[2]{0}', space=sflag, size = 0x8, scoped, tag = 'scoped memory for tpu_custom_call.1']
    %7 = vsyncpa [#allocation3], 0
    %s8 = scalar_lea.sflag [#allocation3], 1
    %9 = vsyncpa %s8, 0
    loop: start=0, step=1, limit=6
    $region2: #{tpu_custom_call.1} parent=1 // loop_pre_header
      _
    $region3: #{tpu_custom_call.1} parent=1 // loop_header
      %s11 = sphi 0, %s15
      %p12 = scmp.ge.s32.totalorder %s11, 6
      %s18 = sphi 0, %s30
      %s19 = sphi 0, %s26
      %s20 = sphi 0, %s18
      %s21 = sphi 0, %s19
      %s22 = sphi 0, %s20
      %s23 = sphi 0, %s21
      %s31 = sphi 0, %s31
      %s33 = sphi 0, %s31
      %s34 = sphi 0, %s33
      %s48 = sphi 0, %s34
      %s56 = sphi 0, %s58
      %s59 = sphi 0, %s56
      %s60 = sphi 0, %s59
      %s76 = sphi 0, %s60
      %s84 = sphi 0, %s86
      %s87 = sphi 0, %s84
      %s88 = sphi 0, %s87
      %s104 = sphi 0, %s88
    $region4: #{tpu_custom_call.1} parent=1 // loop_header_branch
      %14 = sbr.rel (%p12) target = $region8
    $region5: #{tpu_custom_call.1} parent=1 // loop_body
      %s16 = ssub.s32 %s11, 1
      %s17 = ssub.s32 %s11, 2
      %s24 = sadd.s32 1, %s19
      %p25 = scmp.ge.s32.totalorder %s24, 2
      %s26 = scalar_select %p25, 0, %s24
      %s27 = sadd.s32 1, %s18
      %s28 = scalar_select %p25, %s27, %s18
      %p29 = scmp.ge.s32.totalorder %s28, 2
      %s30 = scalar_select %p29, 0, %s28
      %s32 = sadd.s32 %s31, 1
      %p35 = scmp.eq.s32.totalorder %s11, 3
      %p36 = scmp.ne.s32.totalorder %s31, %s33
      %p37 = scmp.eq.s32.totalorder %s11, 0
      %p38 = por %p36, %p37
      %p39 = scmp.ne.s32.totalorder %s31, %s33
      %p40 = scmp.eq.s32.totalorder %s16, 3
      %p41 = por %p39, %p40
      %p42 = scmp.ne.s32.totalorder %s33, %s34
      %p43 = scmp.eq.s32.totalorder %s16, 0
      %p44 = por %p42, %p43
      %p45 = scmp.ne.s32.totalorder %s33, %s34
      %p46 = scmp.eq.s32.totalorder %s17, 3
      %p47 = por %p45, %p46
      %p49 = scmp.ne.s32.totalorder %s34, %s48
      %p50 = scmp.eq.s32.totalorder %s17, 0
      %p51 = por %p49, %p50
      %s52 = ssub.s32 %s18, %s30
      %s53 = ssub.s32 %s19, %s26
      %s54 = sor.u32 %s52, %s53
      %p55 = scmp.eq.s32.totalorder %s54, 0
      %s57 = sadd.s32 %s56, 1
      %s58 = scalar_select %p55, %s56, %s57
      %p61 = pneg %p55
      %p62 = scmp.eq.s32.totalorder %s11, 3
      %p63 = por %p61, %p62
      %p64 = scmp.ne.s32.totalorder %s56, %s59
      %p65 = scmp.eq.s32.totalorder %s11, 0
      %p66 = por %p64, %p65
      %p67 = scmp.ne.s32.totalorder %s56, %s59
      %p68 = scmp.eq.s32.totalorder %s16, 3
      %p69 = por %p67, %p68
      %p70 = scmp.ne.s32.totalorder %s59, %s60
      %p71 = scmp.eq.s32.totalorder %s16, 0
      %p72 = por %p70, %p71
      %p73 = scmp.ne.s32.totalorder %s59, %s60
      %p74 = scmp.eq.s32.totalorder %s17, 3
      %p75 = por %p73, %p74
      %p77 = scmp.ne.s32.totalorder %s60, %s76
      %p78 = scmp.eq.s32.totalorder %s17, 0
      %p79 = por %p77, %p78
      %s80 = ssub.s32 %s18, %s30
      %s81 = ssub.s32 %s19, %s26
      %s82 = sor.u32 %s80, %s81
      %p83 = scmp.eq.s32.totalorder %s82, 0
      %s85 = sadd.s32 %s84, 1
      %s86 = scalar_select %p83, %s84, %s85
      %p89 = pneg %p83
      %p90 = scmp.eq.s32.totalorder %s11, 3
      %p91 = por %p89, %p90
      %p92 = scmp.ne.s32.totalorder %s84, %s87
      %p93 = scmp.eq.s32.totalorder %s11, 0
      %p94 = por %p92, %p93
      %p95 = scmp.ne.s32.totalorder %s84, %s87
      %p96 = scmp.eq.s32.totalorder %s16, 3
      %p97 = por %p95, %p96
      %p98 = scmp.ne.s32.totalorder %s87, %s88
      %p99 = scmp.eq.s32.totalorder %s16, 0
      %p100 = por %p98, %p99
      %p101 = scmp.ne.s32.totalorder %s87, %s88
      %p102 = scmp.eq.s32.totalorder %s17, 3
      %p103 = por %p101, %p102
      %p105 = scmp.ne.s32.totalorder %s88, %s104
      %p106 = scmp.eq.s32.totalorder %s17, 0
      %p107 = por %p105, %p106
      %p108 = scmp.le.s32.totalorder 1, %s11
      %p109 = scmp.lt.s32.totalorder %s11, 5
      %p110 = pnand %p108, %p109
      %p111 = pneg %p110
      // Predicated region
      $region9: #{tpu_custom_call.1} parent=5 // pred_check
        _
      $region10: #{tpu_custom_call.1} parent=5 // pred_check_branch
        %113 = sbr.rel (%p110) target = $region12
      $region11: #{tpu_custom_call.1} parent=5 // pred_region
        %s114 = ssub.s32 %s11, 1
        // Predicated region
        $region13: #{tpu_custom_call.1} parent=11 // pred_check
          %p115 = pneg %p44
        $region14: #{tpu_custom_call.1} parent=11 // pred_check_branch
          %117 = sbr.rel (%p115) target = $region16
        $region15: #{tpu_custom_call.1} parent=11 // pred_region
          _
        $region16: #{tpu_custom_call.1} parent=11 // pred_fallthru
          _
      $region12: #{tpu_custom_call.1} parent=5 // pred_fallthru
        _
      %p118 = scmp.lt.s32.totalorder %s11, 4
      // Predicated region
      $region17: #{tpu_custom_call.1} parent=5 // pred_check
        %p119 = pneg %p118
      $region18: #{tpu_custom_call.1} parent=5 // pred_check_branch
        %121 = sbr.rel (%p119) target = $region20
      $region19: #{tpu_custom_call.1} parent=5 // pred_region
        // Predicated region
        $region21: #{tpu_custom_call.1} parent=19 // pred_check
          %p122 = pneg %p66
        $region22: #{tpu_custom_call.1} parent=19 // pred_check_branch
          %124 = sbr.rel (%p122) target = $region24
        $region23: #{tpu_custom_call.1} parent=19 // pred_region
          %p125 = scmp.lt.s32.totalorder %s18, 1
          %s126 = scalar_select %p125, %s18, 1
          %p127 = scmp.lt.s32.totalorder %s19, 1
          %s128 = scalar_select %p127, %s19, 1
          %s129 = smul.addr %s126, 2
          %s130 = sadd.s32 %s128, %s129
          %s131 = smul.addr %s130, 4
          %s132 = scalar_lea.vmem %s1, %s131
        $region24: #{tpu_custom_call.1} parent=19 // pred_fallthru
          _
      $region20: #{tpu_custom_call.1} parent=5 // pred_fallthru
        _
      %p133 = scmp.le.s32.totalorder 1, %s11
      %p134 = scmp.lt.s32.totalorder %s11, 5
      %p135 = pnand %p133, %p134
      %p136 = pneg %p135
      // Predicated region
      $region25: #{tpu_custom_call.1} parent=5 // pred_check
        _
      $region26: #{tpu_custom_call.1} parent=5 // pred_check_branch
        %138 = sbr.rel (%p135) target = $region28
      $region27: #{tpu_custom_call.1} parent=5 // pred_region
        %s139 = ssub.s32 %s11, 1
        %p140 = pneg %p44
        %p141 = pneg %p41
        %p142 = scmp.lt.s32.totalorder %s20, 1
        %s143 = scalar_select %p142, %s20, 1
        %p144 = scmp.lt.s32.totalorder %s21, 1
        %s145 = scalar_select %p144, %s21, 1
        %s146 = smul.addr %s143, 2
        %s147 = sadd.s32 %s145, %s146
        %s148 = smul.addr %s147, 4
        %s149 = scalar_lea.vmem %s1, %s148
        %p150 = pneg %p72
        %p151 = pneg %p69
        %p152 = pneg %p100
        %p153 = pneg %p97
        %s154 = sand.u32 %s87, 1
        %s155 = scalar_lea.sflag [#allocation3], %s154
        %s156 = sand.u32 %s87, 1
        %s157 = smul.addr %s156, 16
        %s158 = scalar_lea.vmem [#allocation2], %s157
        %p159 = scmp.lt.s32.totalorder %s20, 1
        %s160 = scalar_select %p159, %s20, 1
        %p161 = scmp.lt.s32.totalorder %s21, 1
        %s162 = scalar_select %p161, %s21, 1
        %s163 = smul.addr %s160, 2
        %s164 = sadd.s32 %s162, %s163
        %s165 = smul.addr %s164, 4
        %s166 = scalar_lea.vmem %s1, %s165
        %v167 = vld [vmem:[%s0] sm:$0xff]
        %v168 = vld [vmem:[%s0 + $0x8] sm:$0xff]
        %v169 = vld [vmem:[%s166] sm:$0xf]
        %vm170 = vcmask 31744
        %v172 = vsel %vm170, %v167, 0
        %v175 = vsel %vm170, %v168, 0
        %vm177 = vcmask 1043456
        %v179 = vsel %vm177, %v169, 0
        %181 = vmatprep.subr.mxu0 0.0
        %182 = vmatpush1.msra.mxu0 0.0
        %183 = vmatprep.subr.mxu0 0.0
        %184 = vmatpush1.msra.mxu0 0.0
        %185 = vmatprep.subr.mxu0 0.0
        %186 = vmatpush1.msra.mxu0 0.0
        %187 = vmatprep.subr.mxu0 0.0
        %188 = vmatpush1.msra.mxu0 0.0
        %189 = vmatprep.subr.mxu0 0.0
        %190 = vmatpush1.msra.mxu0 0.0
        %191 = vmatprep.subr.mxu0 0.0
        %192 = vmatpush1.msra.mxu0 0.0
        %193 = vmatprep.subr.mxu0 0.0
        %194 = vmatpush1.msra.mxu0 0.0
        %195 = vmatprep.subr.mxu0 0.0
        %196 = vmatpush1.msra.mxu0 0.0
        %197 = vmatprep.subr.mxu0 0.0
        %198 = vmatpush1.msra.mxu0 0.0
        %199 = vmatprep.subr.mxu0 0.0
        %200 = vmatpush1.msra.mxu0 0.0
        %201 = vmatprep.subr.mxu0 0.0
        %202 = vmatpush1.msra.mxu0 0.0
        %203 = vmatprep.subr.mxu0 0.0
        %204 = vmatpush1.msra.mxu0 0.0
        %205 = vmatprep.subr.mxu0 0.0
        %206 = vmatpush1.msra.mxu0 0.0
        %207 = vmatprep.subr.mxu0 0.0
        %208 = vmatpush1.msra.mxu0 0.0
        %209 = vmatprep.subr.mxu0 0.0
        %210 = vmatpush1.msra.mxu0 0.0
        %211 = vmatprep.subr.mxu0 0.0
        %212 = vmatpush1.msra.mxu0 %v179
        %213 = vmatprep.subr.mxu0 0.0
        %214 = vmatpush2.msra.mxu0 0.0
        %215 = vmatprep.subr.mxu0 0.0
        %216 = vmatpush2.msra.mxu0 0.0
        %217 = vmatprep.subr.mxu0 0.0
        %218 = vmatpush2.msra.mxu0 0.0
        %219 = vmatprep.subr.mxu0 0.0
        %220 = vmatpush2.msra.mxu0 0.0
        %221 = vmatprep.subr.mxu0 0.0
        %222 = vmatpush2.msra.mxu0 0.0
        %223 = vmatprep.subr.mxu0 0.0
        %224 = vmatpush2.msra.mxu0 0.0
        %225 = vmatprep.subr.mxu0 0.0
        %226 = vmatpush2.msra.mxu0 0.0
        %227 = vmatprep.subr.mxu0 0.0
        %228 = vmatpush2.msra.mxu0 0.0
        %229 = vmatprep.subr.mxu0 0.0
        %230 = vmatpush2.msra.mxu0 0.0
        %231 = vmatprep.subr.mxu0 0.0
        %232 = vmatpush2.msra.mxu0 0.0
        %233 = vmatprep.subr.mxu0 0.0
        %234 = vmatpush2.msra.mxu0 0.0
        %235 = vmatprep.subr.mxu0 0.0
        %236 = vmatpush2.msra.mxu0 0.0
        %237 = vmatprep.subr.mxu0 0.0
        %238 = vmatpush2.msra.mxu0 0.0
        %239 = vmatprep.subr.mxu0 0.0
        %240 = vmatpush2.msra.mxu0 0.0
        %241 = vmatprep.subr.mxu0 0.0
        %242 = vmatpush2.msra.mxu0 0.0
        %243 = vmatprep.subr.mxu0 0.0
        %244 = vmatpush2.msra.mxu0 0.0
        %245 = vmatprep.mubr.f32.mxu0 0.0
        %246 = vmatmul.mubr.f32.gmra.mxu0 %v172
        %v247 = vpop.f32.mrf.mxu0
        %v248 = vadd.f32 0.0, %v247
        %v249 = vpop.f32.mrf.mxu0
        %250 = vmatprep.mubr.f32.mxu0 0.0
        %251 = vmatmul.mubr.f32.gmra.mxu0 %v175
        %v252 = vpop.f32.mrf.mxu0
        %v253 = vadd.f32 0.0, %v252
        %v254 = vpop.f32.mrf.mxu0
        %255 = vdwg.mxu0
        %256 = vst [vmem:[%s158] sm:$0xff] %v248
        %257 = vst [vmem:[%s158 + $0x8] sm:$0xff] %v253
        %s258 = sand.u32 %s87, 1
        %s259 = scalar_lea.sflag [#allocation3], %s258
        %s260 = sand.u32 %s87, 1
        %s261 = smul.addr %s260, 16
        %s262 = scalar_lea.vmem [#allocation2], %s261
        // Predicated region
        $region29: #{tpu_custom_call.1} parent=27 // pred_check
          %p263 = pneg %p97
        $region30: #{tpu_custom_call.1} parent=27 // pred_check_branch
          %265 = sbr.rel (%p263) target = $region32
        $region31: #{tpu_custom_call.1} parent=27 // pred_region
          %s267 = ssub.s32 256, 256
          %268 = vsyncadd %s259, %s267
          %s269 = smul.addr %s20, 4
          %s270 = sadd.s32 %s21, %s269
          %s271 = smul.addr %s270, 128
          %s272 = scalar_lea.hbm %s2, %s271
          %s273 = sshll.u32 %s262, 4
          %s274 = int_to_ptr.vmem [resolvable:$true] %s273
          %279 = dma.vmem_to_hbm [thread:$0]  %s274, 256, %s272, %s259, 128, 256, 8
        $region32: #{tpu_custom_call.1} parent=27 // pred_fallthru
          _
      $region28: #{tpu_custom_call.1} parent=5 // pred_fallthru
        _
      %p280 = scmp.le.s32.totalorder 2, %s11
      // Predicated region
      $region33: #{tpu_custom_call.1} parent=5 // pred_check
        %p281 = pneg %p280
      $region34: #{tpu_custom_call.1} parent=5 // pred_check_branch
        %283 = sbr.rel (%p281) target = $region36
      $region35: #{tpu_custom_call.1} parent=5 // pred_region
        %s284 = ssub.s32 %s11, 2
        // Predicated region
        $region37: #{tpu_custom_call.1} parent=35 // pred_check
          %p285 = pneg %p103
        $region38: #{tpu_custom_call.1} parent=35 // pred_check_branch
          %287 = sbr.rel (%p285) target = $region40
        $region39: #{tpu_custom_call.1} parent=35 // pred_region
          %s288 = sand.u32 %s88, 1
          %s289 = scalar_lea.sflag [#allocation3], %s288
          %s290 = sand.u32 %s88, 1
          %s291 = smul.addr %s290, 16
          %s292 = scalar_lea.vmem [#allocation2], %s291
          %293 = dma.done %s289, 256
        $region40: #{tpu_custom_call.1} parent=35 // pred_fallthru
          _
      $region36: #{tpu_custom_call.1} parent=5 // pred_fallthru
        _
    $region6: #{tpu_custom_call.1} parent=1 // loop_footer
      %s15 = sadd.s32 1, %s11
    $region7: #{tpu_custom_call.1} parent=1 // loop_footer_branch
      %10 = sbr.rel target = $region3
    $region8: #{tpu_custom_call.1} parent=1 // loop_exit
      _
    %294 = vsyncpa [#allocation3], 1
    %s295 = scalar_lea.sflag [#allocation3], 1
    %296 = vsyncpa %s295, 1

</llo_original>
